<compile_context>
chip_gen: v7x
topology: tpu7x:2x2x1
jax: 0.10.0
libtpu: 0.0.40
codegen_flags: <defaults>
</compile_context>

<pallas_src>
import jax
import jax.numpy as jnp
from jax.experimental import pallas as pl
from jax.experimental.pallas import tpu as pltpu

# ----- model hyperparameters (mirror torch MDN defaults) ---------------------
X_DIM = 1
Y_DIM = 2
K = 10
HIDDEN_DIMS = [32, 32]
VAR_MAX = 0          # A == 0  ->  var = exp(fc_var(x))
MEAN_MIN = -3.0
MEAN_MAX = 3.0

OUT_COLS = 3 * Y_DIM * K   # 60, grouped [pi (Y_DIM*K) | mean (Y_DIM*K) | var (Y_DIM*K)]

# Default batch tile. ~0.6 KB VMEM per row (x + h1 + h2 + z + out), doubled
# for double-buffering -> a few MB per tile: comfortably inside default
# scoped VMEM on v5e (16 MiB), v6e (32 MiB) and v7x (32 MiB of 64 MiB).
DEFAULT_TILE_B = 2048


def mdn_kernel(x_ref, w1_ref, b1_ref, w2_ref, b2_ref, wo_ref, bo_ref, out_ref):
    """One batch tile of the whole MDN forward, fully in VMEM.

    x_ref  : (TILE_B, X_DIM)
    w1/b1  : (X_DIM, h1), (1, h1)
    w2/b2  : (h1, h2),    (1, h2)
    wo/bo  : (h2, 3*Y_DIM*K), (1, 3*Y_DIM*K)  columns grouped by head type
    out    : (TILE_B, 3*Y_DIM*K)  lane-dense slab [pi | mean | var]
    """
    x = x_ref[...]

    # ---- hidden stack: (Linear + Tanh) * 2 ----------------------------------
    if x.shape[1] == 1:
        # x_dim == 1: (B,1)@(1,h1) is an outer product with contraction
        # length 1 -> do it as a VPU broadcast multiply instead of an MXU trip.
        h = jnp.tanh(x * w1_ref[...] + b1_ref[...])
    else:
        h = jnp.tanh(
            jnp.dot(x, w1_ref[...], preferred_element_type=jnp.float32)
            + b1_ref[...]
        )
    h = jnp.tanh(
        jnp.dot(h, w2_ref[...], preferred_element_type=jnp.float32)
        + b2_ref[...]
    )

    # ---- fused MoG output heads: one matmul for all y_dim * 3 linears -------
    z = (
        jnp.dot(h, wo_ref[...], preferred_element_type=jnp.float32)
        + bo_ref[...]
    )  # (TILE_B, 3*Y_DIM*K)

    tb = z.shape[0]
    yk = Y_DIM * K

    # pi = softmax over each k-group independently (max-stabilized)
    logits = z[:, :yk].reshape(tb, Y_DIM, K)
    m = jnp.max(logits, axis=-1, keepdims=True)
    e = jnp.exp(logits - m)
    denom = jnp.sum(e, axis=-1, keepdims=True)
    pi = (e * pl.reciprocal(denom, approx=True)).reshape(tb, yk)

    # var: A == 0 -> exp, else A * sigmoid (trace-time branch)
    if VAR_MAX == 0:
        var = jnp.exp(z[:, 2 * yk:])
    else:
        var = VAR_MAX * jax.nn.sigmoid(z[:, 2 * yk:])

    out_ref[:, :yk] = pi
    out_ref[:, yk:2 * yk] = z[:, yk:2 * yk]   # mean = fc_mean(x)
    out_ref[:, 2 * yk:] = var


def init_params(key):
    """Deterministic replication of MDN.weight_init():
    Linear weights ~ N(0, 0.01), biases = 0, except fc_mean.bias ~ U(mean_min, mean_max).
    All y_dim*3 output heads are fused into one (h2, 3*Y_DIM*K) weight with
    columns grouped by head type: [pi_d0..pi_dY | mean_d0..mean_dY | var_d0..var_dY].
    """
    h1, h2 = HIDDEN_DIMS
    keys = jax.random.split(key, 3 + Y_DIM)

    w1 = 0.01 * jax.random.normal(keys[0], (X_DIM, h1), jnp.float32)
    b1 = jnp.zeros((1, h1), jnp.float32)
    w2 = 0.01 * jax.random.normal(keys[1], (h1, h2), jnp.float32)
    b2 = jnp.zeros((1, h2), jnp.float32)

    wo = 0.01 * jax.random.normal(keys[2], (h2, OUT_COLS), jnp.float32)
    bo = jnp.zeros((1, OUT_COLS), jnp.float32)
    yk = Y_DIM * K
    for d in range(Y_DIM):
        mean_bias = jax.random.uniform(
            keys[3 + d], (K,), jnp.float32, minval=MEAN_MIN, maxval=MEAN_MAX
        )
        start = yk + d * K   # mean group lives in columns [yk, 2*yk)
        bo = bo.at[0, start:start + K].set(mean_bias)

    return w1, b1, w2, b2, wo, bo


def mdn_forward(x, params, tile_b=DEFAULT_TILE_B):
    w1, b1, w2, b2, wo, bo = params
    h1, h2 = HIDDEN_DIMS
    B = x.shape[0]

    # Pick a batch tile: multiple of 8 (sublane constraint), no larger than
    # the padded batch. Keep it modest so double-buffered tiles fit the
    # default scoped VMEM on every generation (incl. v7x's 64 MiB physical).
    tile_b = max(8, min(int(tile_b), pl.cdiv(B, 8) * 8))
    tile_b = (tile_b // 8) * 8
    b_pad = pl.cdiv(B, tile_b) * tile_b
    if b_pad != B:
        x = jnp.pad(x, ((0, b_pad - B), (0, 0)))

    grid = (b_pad // tile_b,)

    flops = 2 * b_pad * (X_DIM * h1 + h1 * h2 + h2 * OUT_COLS)
    transcendentals = b_pad * (h1 + h2 + 2 * Y_DIM * K)   # tanh + softmax exp + var exp
    bytes_accessed = 4 * (
        b_pad * X_DIM + b_pad * OUT_COLS
        + X_DIM * h1 + h1 + h1 * h2 + h2 + h2 * OUT_COLS + OUT_COLS
    )

    resident = lambda i: (0, 0)   # weights/biases: same block every grid step

    z = pl.pallas_call(
        mdn_kernel,
        out_shape=jax.ShapeDtypeStruct((b_pad, OUT_COLS), jnp.float32),
        grid=grid,
        in_specs=[
            pl.BlockSpec((tile_b, X_DIM), lambda i: (i, 0)),
            pl.BlockSpec((X_DIM, h1), resident),
            pl.BlockSpec((1, h1), resident),
            pl.BlockSpec((h1, h2), resident),
            pl.BlockSpec((1, h2), resident),
            pl.BlockSpec((h2, OUT_COLS), resident),
            pl.BlockSpec((1, OUT_COLS), resident),
        ],
        out_specs=pl.BlockSpec((tile_b, OUT_COLS), lambda i: (i, 0)),
        compiler_params=pltpu.CompilerParams(
            dimension_semantics=("parallel",),   # shard batch tiles across TCs (v7x)
        ),
        cost_estimate=pl.CostEstimate(
            flops=int(flops),
            transcendentals=int(transcendentals),
            bytes_accessed=int(bytes_accessed),
        ),
    )(x, w1, b1, w2, b2, wo, bo)

    z = z[:B]   # strip batch padding
    # lane-dense slab (B, 3, Y_DIM, K) -> torch MoGOut layout (Y_DIM, 3, B, K)
    return z.reshape(B, 3, Y_DIM, K).transpose(2, 1, 0, 3)


def _mdn_reference(x, params):
    """Pure-JAX reference for correctness checking."""
    w1, b1, w2, b2, wo, bo = params
    h = jnp.tanh(x @ w1 + b1)
    h = jnp.tanh(h @ w2 + b2)
    z = h @ wo + bo
    B = x.shape[0]
    yk = Y_DIM * K
    pi = jax.nn.softmax(z[:, :yk].reshape(B, Y_DIM, K), axis=-1).reshape(B, yk)
    mean = z[:, yk:2 * yk]
    var = jnp.exp(z[:, 2 * yk:]) if VAR_MAX == 0 else VAR_MAX * jax.nn.sigmoid(z[:, 2 * yk:])
    full = jnp.concatenate([pi, mean, var], axis=-1)
    return full.reshape(B, 3, Y_DIM, K).transpose(2, 1, 0, 3)


if __name__ == "__main__":
    key = jax.random.PRNGKey(0)
    k_params, k_x = jax.random.split(key)

    params = init_params(k_params)

    B = 8
    x = jax.random.normal(k_x, (B, X_DIM), jnp.float32)

    out = mdn_forward(x, params)
    out = jax.block_until_ready(out)

    assert out.shape == (Y_DIM, 3, B, K), out.shape
    assert out.dtype == jnp.float32
    # basic sanity: mixture weights sum to 1 (approx reciprocal -> loose tol),
    # variances positive.
    pi_sums = jnp.sum(out[:, 0, :, :], axis=-1)
    assert bool(jnp.allclose(pi_sums, 1.0, atol=1e-2)), pi_sums
    assert bool(jnp.all(out[:, 2, :, :] > 0.0))

    # cross-check against a pure-JAX reference
    ref = _mdn_reference(x, params)
    assert bool(jnp.allclose(out, ref, rtol=1e-2, atol=1e-2))

    print("KERNEL_OK")
</pallas_src>

<mosaic_0001>
module attributes {stable_mosaic.version = 11 : i64} {
  func.func @mdn_kernel(%arg0: i32, %arg1: memref<8x1xf32, #tpu.memory_space<vmem>>, %arg2: memref<1x32xf32, #tpu.memory_space<vmem>>, %arg3: memref<1x32xf32, #tpu.memory_space<vmem>>, %arg4: memref<32x32xf32, #tpu.memory_space<vmem>>, %arg5: memref<1x32xf32, #tpu.memory_space<vmem>>, %arg6: memref<32x60xf32, #tpu.memory_space<vmem>>, %arg7: memref<1x60xf32, #tpu.memory_space<vmem>>, %arg8: memref<8x60xf32, #tpu.memory_space<vmem>>) attributes {dimension_semantics = [#tpu.dimension_semantics<parallel>], iteration_bounds = array<i64: 1>, scalar_prefetch = 0 : i64, scratch_operands = 0 : i64, tpu.core_type = #tpu.core_type<tc>, window_params = [{transform_indices = @transform_0, window_bounds = array<i64: 8, 1>}, {pipeline_mode = #tpu.pipeline_mode<synchronous>, transform_indices = @transform_1, window_bounds = array<i64: 1, 32>}, {pipeline_mode = #tpu.pipeline_mode<synchronous>, transform_indices = @transform_2, window_bounds = array<i64: 1, 32>}, {pipeline_mode = #tpu.pipeline_mode<synchronous>, transform_indices = @transform_3, window_bounds = array<i64: 32, 32>}, {pipeline_mode = #tpu.pipeline_mode<synchronous>, transform_indices = @transform_4, window_bounds = array<i64: 1, 32>}, {pipeline_mode = #tpu.pipeline_mode<synchronous>, transform_indices = @transform_5, window_bounds = array<i64: 32, 60>}, {pipeline_mode = #tpu.pipeline_mode<synchronous>, transform_indices = @transform_6, window_bounds = array<i64: 1, 60>}, {transform_indices = @transform_7, window_bounds = array<i64: 8, 60>}]} {
    %c0 = arith.constant 0 : index
    %c0_0 = arith.constant 0 : index
    %0 = vector.load %arg1[%c0, %c0_0] : memref<8x1xf32, #tpu.memory_space<vmem>>, vector<8x1xf32>
    %c0_1 = arith.constant 0 : index
    %c0_2 = arith.constant 0 : index
    %1 = vector.load %arg2[%c0_1, %c0_2] : memref<1x32xf32, #tpu.memory_space<vmem>>, vector<1x32xf32>
    %2 = vector.broadcast %0 : vector<8x1xf32> to vector<8x32xf32>
    %3 = vector.broadcast %1 : vector<1x32xf32> to vector<8x32xf32>
    %4 = arith.mulf %2, %3 : vector<8x32xf32>
    %c0_3 = arith.constant 0 : index
    %c0_4 = arith.constant 0 : index
    %5 = vector.load %arg3[%c0_3, %c0_4] : memref<1x32xf32, #tpu.memory_space<vmem>>, vector<1x32xf32>
    %6 = vector.broadcast %5 : vector<1x32xf32> to vector<8x32xf32>
    %7 = arith.addf %4, %6 : vector<8x32xf32>
    %8 = math.tanh %7 : vector<8x32xf32>
    %c0_5 = arith.constant 0 : index
    %c0_6 = arith.constant 0 : index
    %9 = vector.load %arg4[%c0_5, %c0_6] : memref<32x32xf32, #tpu.memory_space<vmem>>, vector<32x32xf32>
    %cst = arith.constant dense<0.000000e+00> : vector<8x32xf32>
    %10 = tpu.matmul %8, %9, %cst {dimension_numbers = #tpu.dot_dimension_numbers<[1], [0], [0], [1], [0, 0, 1, 1], [], []>} : vector<8x32xf32>, vector<32x32xf32>, vector<8x32xf32> -> vector<8x32xf32>
    %c0_7 = arith.constant 0 : index
    %c0_8 = arith.constant 0 : index
    %11 = vector.load %arg5[%c0_7, %c0_8] : memref<1x32xf32, #tpu.memory_space<vmem>>, vector<1x32xf32>
    %12 = vector.broadcast %11 : vector<1x32xf32> to vector<8x32xf32>
    %13 = arith.addf %10, %12 : vector<8x32xf32>
    %14 = math.tanh %13 : vector<8x32xf32>
    %c0_9 = arith.constant 0 : index
    %c0_10 = arith.constant 0 : index
    %15 = vector.load %arg6[%c0_9, %c0_10] : memref<32x60xf32, #tpu.memory_space<vmem>>, vector<32x60xf32>
    %cst_11 = arith.constant dense<0.000000e+00> : vector<8x60xf32>
    %16 = tpu.matmul %14, %15, %cst_11 {dimension_numbers = #tpu.dot_dimension_numbers<[1], [0], [0], [1], [0, 0, 1, 1], [], []>} : vector<8x32xf32>, vector<32x60xf32>, vector<8x60xf32> -> vector<8x60xf32>
    %c0_12 = arith.constant 0 : index
    %c0_13 = arith.constant 0 : index
    %17 = vector.load %arg7[%c0_12, %c0_13] : memref<1x60xf32, #tpu.memory_space<vmem>>, vector<1x60xf32>
    %18 = vector.broadcast %17 : vector<1x60xf32> to vector<8x60xf32>
    %19 = arith.addf %16, %18 : vector<8x60xf32>
    %20 = vector.extract_strided_slice %19 {offsets = [0, 0], sizes = [8, 20], strides = [1, 1]} : vector<8x60xf32> to vector<8x20xf32>
    %21 = vector.shape_cast %20 : vector<8x20xf32> to vector<8x2x10xf32>
    %cst_14 = arith.constant dense<0xFF800000> : vector<8x2xf32>
    %22 = vector.multi_reduction <maximumf>, %21, %cst_14 [2] : vector<8x2x10xf32> to vector<8x2xf32>
    %23 = vector.shape_cast %22 : vector<8x2xf32> to vector<8x2x1xf32>
    %24 = vector.broadcast %23 : vector<8x2x1xf32> to vector<8x2x10xf32>
    %25 = arith.subf %21, %24 : vector<8x2x10xf32>
    %26 = math.exp %25 : vector<8x2x10xf32>
    %cst_15 = arith.constant dense<0.000000e+00> : vector<8x2xf32>
    %27 = vector.multi_reduction <add>, %26, %cst_15 [2] : vector<8x2x10xf32> to vector<8x2xf32>
    %28 = vector.shape_cast %27 : vector<8x2xf32> to vector<8x2x1xf32>
    %29 = tpu.reciprocal %28 {approx = true} : vector<8x2x1xf32> -> vector<8x2x1xf32>
    %30 = vector.broadcast %29 : vector<8x2x1xf32> to vector<8x2x10xf32>
    %31 = arith.mulf %26, %30 : vector<8x2x10xf32>
    %32 = vector.shape_cast %31 : vector<8x2x10xf32> to vector<8x20xf32>
    %33 = vector.extract_strided_slice %19 {offsets = [0, 40], sizes = [8, 20], strides = [1, 1]} : vector<8x60xf32> to vector<8x20xf32>
    %34 = math.exp %33 : vector<8x20xf32>
    %c0_16 = arith.constant 0 : index
    %c0_17 = arith.constant 0 : index
    %35 = vector.load %arg8[%c0_16, %c0_17] : memref<8x60xf32, #tpu.memory_space<vmem>>, vector<8x20xf32>
    tpu.vector_store %arg8[%c0_16, %c0_17], %32 {strides = array<i32>} : memref<8x60xf32, #tpu.memory_space<vmem>>, vector<8x20xf32>,
    %36 = vector.extract_strided_slice %19 {offsets = [0, 20], sizes = [8, 20], strides = [1, 1]} : vector<8x60xf32> to vector<8x20xf32>
    %c0_18 = arith.constant 0 : index
    %c20 = arith.constant 20 : index
    %37 = vector.load %arg8[%c0_18, %c20] : memref<8x60xf32, #tpu.memory_space<vmem>>, vector<8x20xf32>
    tpu.vector_store %arg8[%c0_18, %c20], %36 {strides = array<i32>} : memref<8x60xf32, #tpu.memory_space<vmem>>, vector<8x20xf32>,
    %c0_19 = arith.constant 0 : index
    %c40 = arith.constant 40 : index
    %38 = vector.load %arg8[%c0_19, %c40] : memref<8x60xf32, #tpu.memory_space<vmem>>, vector<8x20xf32>
    tpu.vector_store %arg8[%c0_19, %c40], %34 {strides = array<i32>} : memref<8x60xf32, #tpu.memory_space<vmem>>, vector<8x20xf32>,
    return
  }
  func.func @transform_0(%arg0: i32) -> (i32, i32) {
    %c0_i32 = arith.constant 0 : i32
    %c0_i32_0 = arith.constant 0 : i32
    return %arg0, %c0_i32 : i32, i32
  }
  func.func @transform_1(%arg0: i32) -> (i32, i32) {
    %c0_i32 = arith.constant 0 : i32
    %c0_i32_0 = arith.constant 0 : i32
    %c0_i32_1 = arith.constant 0 : i32
    return %c0_i32, %c0_i32_0 : i32, i32
  }
  func.func @transform_2(%arg0: i32) -> (i32, i32) {
    %c0_i32 = arith.constant 0 : i32
    %c0_i32_0 = arith.constant 0 : i32
    %c0_i32_1 = arith.constant 0 : i32
    return %c0_i32, %c0_i32_0 : i32, i32
  }
  func.func @transform_3(%arg0: i32) -> (i32, i32) {
    %c0_i32 = arith.constant 0 : i32
    %c0_i32_0 = arith.constant 0 : i32
    %c0_i32_1 = arith.constant 0 : i32
    return %c0_i32, %c0_i32_0 : i32, i32
  }
  func.func @transform_4(%arg0: i32) -> (i32, i32) {
    %c0_i32 = arith.constant 0 : i32
    %c0_i32_0 = arith.constant 0 : i32
    %c0_i32_1 = arith.constant 0 : i32
    return %c0_i32, %c0_i32_0 : i32, i32
  }
  func.func @transform_5(%arg0: i32) -> (i32, i32) {
    %c0_i32 = arith.constant 0 : i32
    %c0_i32_0 = arith.constant 0 : i32
    %c0_i32_1 = arith.constant 0 : i32
    return %c0_i32, %c0_i32_0 : i32, i32
  }
  func.func @transform_6(%arg0: i32) -> (i32, i32) {
    %c0_i32 = arith.constant 0 : i32
    %c0_i32_0 = arith.constant 0 : i32
    %c0_i32_1 = arith.constant 0 : i32
    return %c0_i32, %c0_i32_0 : i32, i32
  }
  func.func @transform_7(%arg0: i32) -> (i32, i32) {
    %c0_i32 = arith.constant 0 : i32
    %c0_i32_0 = arith.constant 0 : i32
    return %arg0, %c0_i32 : i32, i32
  }
}

</mosaic_0001>

<llo_original>
// kernel: tpu_custom_call.1
$region0: #{tpu_custom_call.1}
  #allocation0 [shape = 'u32[]', space=smem, size = 0x4, offset = 0x4, fixed_abs, tag = 'smem constant byte address 0x4 - core index']
  #allocation1 [shape = 'u32[144,128]{1,0:T(1,128)}', space=vmem, size = 0x12000, scoped, tag = 'internal scratch']
  %s0 = inlined_call_operand.vmem [shape: f32[8,1], index: 0, kind: input, shape index: {}]
  %s1 = inlined_call_operand.vmem [shape: f32[1,32], index: 1, kind: input, shape index: {}]
  %s2 = inlined_call_operand.vmem [shape: f32[1,32], index: 2, kind: input, shape index: {}]
  %s3 = inlined_call_operand.hbm [shape: f32[32,32], index: 3, kind: input, shape index: {}]
  %s4 = inlined_call_operand.vmem [shape: f32[1,32], index: 4, kind: input, shape index: {}]
  %s5 = inlined_call_operand.hbm [shape: f32[32,60], index: 5, kind: input, shape index: {}]
  %s6 = inlined_call_operand.vmem [shape: f32[1,60], index: 6, kind: input, shape index: {}]
  %s7 = inlined_call_operand.hbm [shape: f32[8,60], index: 7, kind: output, shape index: {}]
  %s8 = sld [smem:[#allocation0]]
  $region46: #{tpu_custom_call.1} parent=0
    _
  %s10 = ssub.s32 1, %s8
  %s11 = scalar_select 0, %s10, %s8
  $region1: #{tpu_custom_call.1} parent=0
    #allocation2 [shape = 'u8[16384]{0}', space=vmem, size = 0x4000, scoped, tag = 'input window, operand 3, single buffered']
    #allocation3 [shape = 's32[1]{0}', space=sflag, size = 0x4, scoped, tag = 'scoped memory for tpu_custom_call.1']
    #allocation4 [shape = 's32[1]{0}', space=sflag, size = 0x4, scoped, tag = 'scoped memory for tpu_custom_call.1']
    #allocation5 [shape = 'u8[16384]{0}', space=vmem, size = 0x4000, scoped, tag = 'input window, operand 5, single buffered']
    #allocation6 [shape = 's32[1]{0}', space=sflag, size = 0x4, scoped, tag = 'scoped memory for tpu_custom_call.1']
    #allocation7 [shape = 'u8[4096]{0}', space=vmem, size = 0x1000, scoped, tag = 'output window, operand 0, single buffered']
    %12 = vsyncpa [#allocation3], 0
    %13 = vsyncpa [#allocation6], 0
    %14 = vsyncpa [#allocation4], 0
    // Predicated region
    $region2: #{tpu_custom_call.1} parent=1 // pred_check
      _
    $region3: #{tpu_custom_call.1} parent=1 // pred_check_branch
      %16 = sbr.rel (0) target = $region5
    $region4: #{tpu_custom_call.1} parent=1 // pred_region
      _
    $region5: #{tpu_custom_call.1} parent=1 // pred_fallthru
      _
    // Predicated region
    $region6: #{tpu_custom_call.1} parent=1 // pred_check
      _
    $region7: #{tpu_custom_call.1} parent=1 // pred_check_branch
      %18 = sbr.rel (0) target = $region9
    $region8: #{tpu_custom_call.1} parent=1 // pred_region
      _
    $region9: #{tpu_custom_call.1} parent=1 // pred_fallthru
      _
    // Predicated region
    $region10: #{tpu_custom_call.1} parent=1 // pred_check
      _
    $region11: #{tpu_custom_call.1} parent=1 // pred_check_branch
      %20 = sbr.rel (0) target = $region13
    $region12: #{tpu_custom_call.1} parent=1 // pred_region
      _
    $region13: #{tpu_custom_call.1} parent=1 // pred_fallthru
      _
    // Predicated region
    $region14: #{tpu_custom_call.1} parent=1 // pred_check
      _
    $region15: #{tpu_custom_call.1} parent=1 // pred_check_branch
      %22 = sbr.rel (0) target = $region17
    $region16: #{tpu_custom_call.1} parent=1 // pred_region
      %s24 = ssub.s32 512, 512
      %25 = vsyncadd [#allocation3], %s24
      %s26 = sshll.u32 [#allocation2], 4
      %s27 = int_to_ptr.vmem [resolvable:$true] %s26
      %32 = dma.hbm_to_vmem [thread:$0]  %s3, 512, %s27, [#allocation3], 128, 128, 8
    $region17: #{tpu_custom_call.1} parent=1 // pred_fallthru
      _
    // Predicated region
    $region18: #{tpu_custom_call.1} parent=1 // pred_check
      _
    $region19: #{tpu_custom_call.1} parent=1 // pred_check_branch
      %34 = sbr.rel (0) target = $region21
    $region20: #{tpu_custom_call.1} parent=1 // pred_region
      _
    $region21: #{tpu_custom_call.1} parent=1 // pred_fallthru
      _
    // Predicated region
    $region22: #{tpu_custom_call.1} parent=1 // pred_check
      _
    $region23: #{tpu_custom_call.1} parent=1 // pred_check_branch
      %36 = sbr.rel (0) target = $region25
    $region24: #{tpu_custom_call.1} parent=1 // pred_region
      %s38 = ssub.s32 512, 512
      %39 = vsyncadd [#allocation6], %s38
      %s40 = sshll.u32 [#allocation5], 4
      %s41 = int_to_ptr.vmem [resolvable:$true] %s40
      %46 = dma.hbm_to_vmem [thread:$0]  %s5, 512, %s41, [#allocation6], 128, 128, 8
    $region25: #{tpu_custom_call.1} parent=1 // pred_fallthru
      _
    // Predicated region
    $region26: #{tpu_custom_call.1} parent=1 // pred_check
      _
    $region27: #{tpu_custom_call.1} parent=1 // pred_check_branch
      %48 = sbr.rel (0) target = $region29
    $region28: #{tpu_custom_call.1} parent=1 // pred_region
      _
    $region29: #{tpu_custom_call.1} parent=1 // pred_fallthru
      _
    // Predicated region
    $region30: #{tpu_custom_call.1} parent=1 // pred_check
      _
    $region31: #{tpu_custom_call.1} parent=1 // pred_check_branch
      %50 = sbr.rel (0) target = $region33
    $region32: #{tpu_custom_call.1} parent=1 // pred_region
      %51 = dma.done [#allocation3], 512
    $region33: #{tpu_custom_call.1} parent=1 // pred_fallthru
      _
    // Predicated region
    $region34: #{tpu_custom_call.1} parent=1 // pred_check
      _
    $region35: #{tpu_custom_call.1} parent=1 // pred_check_branch
      %53 = sbr.rel (0) target = $region37
    $region36: #{tpu_custom_call.1} parent=1 // pred_region
      %54 = dma.done [#allocation6], 512
    $region37: #{tpu_custom_call.1} parent=1 // pred_fallthru
      _
    %v55 = vld [vmem:[%s0] sm:$0xff]
    %v56 = vld [vmem:[%s1] sm:$0x1]
    %58 = vset.pattern.permute.xlu0 0
    %59 = vperm.xlu0 %58, %v55
    %v60 = vpop.permute.xlu0 %59
    %v63 = vlaneseq
    %v64 = vshrl.u32 %v63, 7
    %v65 = vsub.s32 0, %v64
    %v66 = vrot.slane %v56, %v65
    %v68 = vmul.f32 %v60, %v66
    %v69 = vld [vmem:[%s2] sm:$0x1]
    %v71 = vlaneseq
    %v72 = vshrl.u32 %v71, 7
    %v73 = vsub.s32 0, %v72
    %v74 = vrot.slane %v69, %v73
    %v76 = vadd.f32 %v68, %v74
    %v77 = vtanh.pop %v76
    %v78 = vld [vmem:[#allocation2] sm:$0xff]
    %v79 = vld [vmem:[#allocation2 + $0x8] sm:$0xff]
    %v80 = vld [vmem:[#allocation2 + $0x10] sm:$0xff]
    %v81 = vld [vmem:[#allocation2 + $0x18] sm:$0xff]
    %v82 = vld [vmem:[%s4] sm:$0x1]
    %v84 = vlaneseq
    %v85 = vshrl.u32 %v84, 7
    %v86 = vsub.s32 0, %v85
    %v87 = vrot.slane %v82, %v86
    %vm89 = vcmask 261120
    %v91 = vsel %vm89, %v77, 0
    %93 = vmatprep.subr.mxu0 0.0
    %94 = vmatpush1.msra.mxu0 %v78
    %95 = vmatprep.subr.mxu0 0.0
    %96 = vmatpush1.msra.mxu0 %v79
    %97 = vmatprep.subr.mxu0 0.0
    %98 = vmatpush1.msra.mxu0 %v80
    %99 = vmatprep.subr.mxu0 0.0
    %100 = vmatpush1.msra.mxu0 %v81
    %101 = vmatprep.subr.mxu0 0.0
    %102 = vmatpush1.msra.mxu0 0.0
    %103 = vmatprep.subr.mxu0 0.0
    %104 = vmatpush1.msra.mxu0 0.0
    %105 = vmatprep.subr.mxu0 0.0
    %106 = vmatpush1.msra.mxu0 0.0
    %107 = vmatprep.subr.mxu0 0.0
    %108 = vmatpush1.msra.mxu0 0.0
    %109 = vmatprep.subr.mxu0 0.0
    %110 = vmatpush1.msra.mxu0 0.0
    %111 = vmatprep.subr.mxu0 0.0
    %112 = vmatpush1.msra.mxu0 0.0
    %113 = vmatprep.subr.mxu0 0.0
    %114 = vmatpush1.msra.mxu0 0.0
    %115 = vmatprep.subr.mxu0 0.0
    %116 = vmatpush1.msra.mxu0 0.0
    %117 = vmatprep.subr.mxu0 0.0
    %118 = vmatpush1.msra.mxu0 0.0
    %119 = vmatprep.subr.mxu0 0.0
    %120 = vmatpush1.msra.mxu0 0.0
    %121 = vmatprep.subr.mxu0 0.0
    %122 = vmatpush1.msra.mxu0 0.0
    %123 = vmatprep.subr.mxu0 0.0
    %124 = vmatpush1.msra.mxu0 0.0
    %125 = vmatprep.subr.mxu0 0.0
    %126 = vmatpush1.msra.mxu0 0.0
    %127 = vmatprep.subr.mxu0 0.0
    %128 = vmatpush1.msra.mxu0 0.0
    %129 = vmatprep.subr.mxu0 0.0
    %130 = vmatpush1.msra.mxu0 0.0
    %131 = vmatprep.subr.mxu0 0.0
    %132 = vmatpush1.msra.mxu0 0.0
    %133 = vmatprep.subr.mxu0 0.0
    %134 = vmatpush1.msra.mxu0 0.0
    %135 = vmatprep.subr.mxu0 0.0
    %136 = vmatpush1.msra.mxu0 0.0
    %137 = vmatprep.subr.mxu0 0.0
    %138 = vmatpush1.msra.mxu0 0.0
    %139 = vmatprep.subr.mxu0 0.0
    %140 = vmatpush1.msra.mxu0 0.0
    %141 = vmatprep.subr.mxu0 0.0
    %142 = vmatpush1.msra.mxu0 0.0
    %143 = vmatprep.subr.mxu0 0.0
    %144 = vmatpush1.msra.mxu0 0.0
    %145 = vmatprep.subr.mxu0 0.0
    %146 = vmatpush1.msra.mxu0 0.0
    %147 = vmatprep.subr.mxu0 0.0
    %148 = vmatpush1.msra.mxu0 0.0
    %149 = vmatprep.subr.mxu0 0.0
    %150 = vmatpush1.msra.mxu0 0.0
    %151 = vmatprep.subr.mxu0 0.0
    %152 = vmatpush1.msra.mxu0 0.0
    %153 = vmatprep.subr.mxu0 0.0
    %154 = vmatpush1.msra.mxu0 0.0
    %155 = vmatprep.subr.mxu0 0.0
    %156 = vmatpush1.msra.mxu0 0.0
    %157 = vmatprep.mubr.f32.mxu0 0.0
    %158 = vmatmul.mubr.f32.gmra.mrb[0].mxu0 %v91
    %v159 = vpop.f32.mrb[0].mxu0
    %v160 = vadd.f32 %v87, %v159
    %v161 = vpop.f32.mrb[0].mxu0
    %162 = vdwg.mxu0
    %v163 = vtanh.pop %v160
    %v164 = vld [vmem:[#allocation5] sm:$0xff]
    %v165 = vld [vmem:[#allocation5 + $0x8] sm:$0xff]
    %v166 = vld [vmem:[#allocation5 + $0x10] sm:$0xff]
    %v167 = vld [vmem:[#allocation5 + $0x18] sm:$0xff]
    %v168 = vld [vmem:[%s6] sm:$0x1]
    %v170 = vlaneseq
    %v171 = vshrl.u32 %v170, 7
    %v172 = vsub.s32 0, %v171
    %v173 = vrot.slane %v168, %v172
    %v176 = vsel %vm89, %v163, 0
    %178 = vmatprep.subr.mxu0 0.0
    %179 = vmatpush1.msra.mxu0 %v164
    %180 = vmatprep.subr.mxu0 0.0
    %181 = vmatpush1.msra.mxu0 %v165
    %182 = vmatprep.subr.mxu0 0.0
    %183 = vmatpush1.msra.mxu0 %v166
    %184 = vmatprep.subr.mxu0 0.0
    %185 = vmatpush1.msra.mxu0 %v167
    %186 = vmatprep.subr.mxu0 0.0
    %187 = vmatpush1.msra.mxu0 0.0
    %188 = vmatprep.subr.mxu0 0.0
    %189 = vmatpush1.msra.mxu0 0.0
    %190 = vmatprep.subr.mxu0 0.0
    %191 = vmatpush1.msra.mxu0 0.0
    %192 = vmatprep.subr.mxu0 0.0
    %193 = vmatpush1.msra.mxu0 0.0
    %194 = vmatprep.subr.mxu0 0.0
    %195 = vmatpush1.msra.mxu0 0.0
    %196 = vmatprep.subr.mxu0 0.0
    %197 = vmatpush1.msra.mxu0 0.0
    %198 = vmatprep.subr.mxu0 0.0
    %199 = vmatpush1.msra.mxu0 0.0
    %200 = vmatprep.subr.mxu0 0.0
    %201 = vmatpush1.msra.mxu0 0.0
    %202 = vmatprep.subr.mxu0 0.0
    %203 = vmatpush1.msra.mxu0 0.0
    %204 = vmatprep.subr.mxu0 0.0
    %205 = vmatpush1.msra.mxu0 0.0
    %206 = vmatprep.subr.mxu0 0.0
    %207 = vmatpush1.msra.mxu0 0.0
    %208 = vmatprep.subr.mxu0 0.0
    %209 = vmatpush1.msra.mxu0 0.0
    %210 = vmatprep.subr.mxu0 0.0
    %211 = vmatpush1.msra.mxu0 0.0
    %212 = vmatprep.subr.mxu0 0.0
    %213 = vmatpush1.msra.mxu0 0.0
    %214 = vmatprep.subr.mxu0 0.0
    %215 = vmatpush1.msra.mxu0 0.0
    %216 = vmatprep.subr.mxu0 0.0
    %217 = vmatpush1.msra.mxu0 0.0
    %218 = vmatprep.subr.mxu0 0.0
    %219 = vmatpush1.msra.mxu0 0.0
    %220 = vmatprep.subr.mxu0 0.0
    %221 = vmatpush1.msra.mxu0 0.0
    %222 = vmatprep.subr.mxu0 0.0
    %223 = vmatpush1.msra.mxu0 0.0
    %224 = vmatprep.subr.mxu0 0.0
    %225 = vmatpush1.msra.mxu0 0.0
    %226 = vmatprep.subr.mxu0 0.0
    %227 = vmatpush1.msra.mxu0 0.0
    %228 = vmatprep.subr.mxu0 0.0
    %229 = vmatpush1.msra.mxu0 0.0
    %230 = vmatprep.subr.mxu0 0.0
    %231 = vmatpush1.msra.mxu0 0.0
    %232 = vmatprep.subr.mxu0 0.0
    %233 = vmatpush1.msra.mxu0 0.0
    %234 = vmatprep.subr.mxu0 0.0
    %235 = vmatpush1.msra.mxu0 0.0
    %236 = vmatprep.subr.mxu0 0.0
    %237 = vmatpush1.msra.mxu0 0.0
    %238 = vmatprep.subr.mxu0 0.0
    %239 = vmatpush1.msra.mxu0 0.0
    %240 = vmatprep.subr.mxu0 0.0
    %241 = vmatpush1.msra.mxu0 0.0
    %242 = vmatprep.mubr.f32.mxu0 0.0
    %243 = vmatmul.mubr.f32.gmra.mrb[0].mxu0 %v176
    %v244 = vpop.f32.mrb[0].mxu0
    %v245 = vadd.f32 %v173, %v244
    %v246 = vpop.f32.mrb[0].mxu0
    %247 = vdwg.mxu0
    %249 = vrot.lane.b32.xlu0 %v245, 118
    %v250 = vpop.permute.xlu0 %249
    %v252 = vcombine.high %v245, 0.0
    %v254 = vunpack.c.l.s4 1983009808
    %v255 = vunpack.c.0.s8 %v254
    %v256 = vlaneseq
    %v257 = vshrl.u32 %v256, 7
    %v258 = vsub.s32 %v255, %v257
    %v259 = vrot.slane %v245, %v258
    %v261 = vunpack.c.l.s4 1983009808
    %v262 = vunpack.c.0.s8 %v261
    %v263 = vlaneseq
    %v264 = vshrl.u32 %v263, 7
    %v265 = vsub.s32 %v262, %v264
    %v266 = vrot.slane %v252, %v265
    %v267 = vcombine.high %v250, 0.0
    %v269 = vunpack.c.l.s4 1983009808
    %v270 = vunpack.c.0.s8 %v269
    %v271 = vlaneseq
    %v272 = vshrl.u32 %v271, 7
    %v273 = vsub.s32 %v270, %v272
    %v274 = vrot.slane %v250, %v273
    %v276 = vunpack.c.l.s4 1983009808
    %v277 = vunpack.c.0.s8 %v276
    %v278 = vlaneseq
    %v279 = vshrl.u32 %v278, 7
    %v280 = vsub.s32 %v277, %v279
    %v281 = vrot.slane %v267, %v280
    %v282 = vcombine.low %v259, %v274
    %v283 = vcombine.high %v259, %v274
    %v285 = vunpack.c.l.s4 1934713408
    %v286 = vunpack.c.0.s8 %v285
    %v287 = vlaneseq
    %v288 = vshrl.u32 %v287, 7
    %v289 = vsub.s32 %v286, %v288
    %v290 = vrot.slane %v282, %v289
    %v292 = vunpack.c.l.s4 1934713408
    %v293 = vunpack.c.0.s8 %v292
    %v294 = vlaneseq
    %v295 = vshrl.u32 %v294, 7
    %v296 = vsub.s32 %v293, %v295
    %v297 = vrot.slane %v283, %v296
    %v298 = vcombine.low %v266, %v281
    %v299 = vcombine.high %v266, %v281
    %v301 = vunpack.c.l.s4 1934713408
    %v302 = vunpack.c.0.s8 %v301
    %v303 = vlaneseq
    %v304 = vshrl.u32 %v303, 7
    %v305 = vsub.s32 %v302, %v304
    %v306 = vrot.slane %v298, %v305
    %v308 = vunpack.c.l.s4 1934713408
    %v309 = vunpack.c.0.s8 %v308
    %v310 = vlaneseq
    %v311 = vshrl.u32 %v310, 7
    %v312 = vsub.s32 %v309, %v311
    %v313 = vrot.slane %v299, %v312
    %v314 = vcombine.high %v290, 0.0
    %v315 = vcombine.high %v297, 0.0
    %v316 = vcombine.high %v306, 0.0
    %v317 = vcombine.high %v313, 0.0
    %vm318 = vcmask 74752
    %v319 = vsel %vm318, %v290, -inf
    %320 = vmax.xlane.f32.xlu0 %v319
    %v321 = vpop.xlane.xlu0 %320
    %v322 = vsel %vm318, %v314, -inf
    %323 = vmax.xlane.f32.xlu0 %v322
    %v324 = vpop.xlane.xlu0 %323
    %v325 = vsel %vm318, %v297, -inf
    %326 = vmax.xlane.f32.xlu0 %v325
    %v327 = vpop.xlane.xlu0 %326
    %v328 = vsel %vm318, %v315, -inf
    %329 = vmax.xlane.f32.xlu0 %v328
    %v330 = vpop.xlane.xlu0 %329
    %v331 = vsel %vm318, %v306, -inf
    %332 = vmax.xlane.f32.xlu0 %v331
    %v333 = vpop.xlane.xlu0 %332
    %v334 = vsel %vm318, %v316, -inf
    %335 = vmax.xlane.f32.xlu0 %v334
    %v336 = vpop.xlane.xlu0 %335
    %v337 = vsel %vm318, %v313, -inf
    %338 = vmax.xlane.f32.xlu0 %v337
    %v339 = vpop.xlane.xlu0 %338
    %v340 = vsel %vm318, %v317, -inf
    %341 = vmax.xlane.f32.xlu0 %v340
    %v342 = vpop.xlane.xlu0 %341
    %v343 = vsub.f32 %v290, %v321
    %v344 = vsub.f32 %v314, %v324
    %v345 = vsub.f32 %v297, %v327
    %v346 = vsub.f32 %v315, %v330
    %v347 = vsub.f32 %v306, %v333
    %v348 = vsub.f32 %v316, %v336
    %v349 = vsub.f32 %v313, %v339
    %v350 = vsub.f32 %v317, %v342
    %v351 = vmul.f32 %v343, 1.442695
    %v352 = vpow.pop %v351
    %v353 = vmul.f32 %v344, 1.442695
    %v354 = vpow.pop %v353
    %v355 = vmul.f32 %v345, 1.442695
    %v356 = vpow.pop %v355
    %v357 = vmul.f32 %v346, 1.442695
    %v358 = vpow.pop %v357
    %v359 = vmul.f32 %v347, 1.442695
    %v360 = vpow.pop %v359
    %v361 = vmul.f32 %v348, 1.442695
    %v362 = vpow.pop %v361
    %v363 = vmul.f32 %v349, 1.442695
    %v364 = vpow.pop %v363
    %v365 = vmul.f32 %v350, 1.442695
    %v366 = vpow.pop %v365
    %v367 = vsel %vm318, %v352, 0.0
    %368 = vadd.xlane.f32.xlu0 %v367
    %v369 = vpop.xlane.xlu0 %368
    %v370 = vsel %vm318, %v354, 0.0
    %371 = vadd.xlane.f32.xlu0 %v370
    %v372 = vpop.xlane.xlu0 %371
    %v373 = vsel %vm318, %v356, 0.0
    %374 = vadd.xlane.f32.xlu0 %v373
    %v375 = vpop.xlane.xlu0 %374
    %v376 = vsel %vm318, %v358, 0.0
    %377 = vadd.xlane.f32.xlu0 %v376
    %v378 = vpop.xlane.xlu0 %377
    %v379 = vsel %vm318, %v360, 0.0
    %380 = vadd.xlane.f32.xlu0 %v379
    %v381 = vpop.xlane.xlu0 %380
    %v382 = vsel %vm318, %v362, 0.0
    %383 = vadd.xlane.f32.xlu0 %v382
    %v384 = vpop.xlane.xlu0 %383
    %v385 = vsel %vm318, %v364, 0.0
    %386 = vadd.xlane.f32.xlu0 %v385
    %v387 = vpop.xlane.xlu0 %386
    %v388 = vsel %vm318, %v366, 0.0
    %389 = vadd.xlane.f32.xlu0 %v388
    %v390 = vpop.xlane.xlu0 %389
    %v391 = vrcp.pop %v369
    %v392 = vrcp.pop %v372
    %v393 = vrcp.pop %v375
    %v394 = vrcp.pop %v378
    %v395 = vrcp.pop %v381
    %v396 = vrcp.pop %v384
    %v397 = vrcp.pop %v387
    %v398 = vrcp.pop %v390
    %v399 = vmul.f32 %v352, %v391
    %v400 = vmul.f32 %v354, %v392
    %v401 = vmul.f32 %v356, %v393
    %v402 = vmul.f32 %v358, %v394
    %v403 = vmul.f32 %v360, %v395
    %v404 = vmul.f32 %v362, %v396
    %v405 = vmul.f32 %v364, %v397
    %v406 = vmul.f32 %v366, %v398
    %v407 = vcombine.low %v399, %v401
    %v409 = vunpack.c.l.s4 1983009808
    %v410 = vunpack.c.0.s8 %v409
    %v411 = vlaneseq
    %v412 = vshrl.u32 %v411, 7
    %v413 = vsub.s32 %v410, %v412
    %v414 = vrot.slane %v407, %v413
    %v415 = vcombine.low %v400, %v402
    %v417 = vunpack.c.l.s4 1983009808
    %v418 = vunpack.c.0.s8 %v417
    %v419 = vlaneseq
    %v420 = vshrl.u32 %v419, 7
    %v421 = vsub.s32 %v418, %v420
    %v422 = vrot.slane %v415, %v421
    %v423 = vcombine.low %v403, %v405
    %v425 = vunpack.c.l.s4 1983009808
    %v426 = vunpack.c.0.s8 %v425
    %v427 = vlaneseq
    %v428 = vshrl.u32 %v427, 7
    %v429 = vsub.s32 %v426, %v428
    %v430 = vrot.slane %v423, %v429
    %v431 = vcombine.low %v404, %v406
    %v433 = vunpack.c.l.s4 1983009808
    %v434 = vunpack.c.0.s8 %v433
    %v435 = vlaneseq
    %v436 = vshrl.u32 %v435, 7
    %v437 = vsub.s32 %v434, %v436
    %v438 = vrot.slane %v431, %v437
    %v439 = vcombine.low %v414, %v422
    %v441 = vunpack.c.l.s4 1934713408
    %v442 = vunpack.c.0.s8 %v441
    %v443 = vlaneseq
    %v444 = vshrl.u32 %v443, 7
    %v445 = vsub.s32 %v442, %v444
    %v446 = vrot.slane %v439, %v445
    %v447 = vcombine.low %v430, %v438
    %v449 = vunpack.c.l.s4 1934713408
    %v450 = vunpack.c.0.s8 %v449
    %v451 = vlaneseq
    %v452 = vshrl.u32 %v451, 7
    %v453 = vsub.s32 %v450, %v452
    %v454 = vrot.slane %v447, %v453
    %v455 = vcombine.low %v446, %v454
    %v456 = vcombine.high %v446, %v454
    %458 = vrot.lane.b32.xlu0 %v456, 10
    %v459 = vpop.permute.xlu0 %458
    %vm461 = vcmask 80896
    %v462 = vsel %vm461, %v455, %v459
    %v463 = vmul.f32 %v245, 1.442695
    %v464 = vpow.pop %v463
    %vm465 = vcmask 162816
    %466 = vst.msk [vmem:[#allocation7] sm:$0xff] %vm465, %v462
    %vm467 = vcmask 326816
    %468 = vst.msk [vmem:[#allocation7] sm:$0xff] %vm467, %v245
    %vm469 = vcmask 490816
    %470 = vst.msk [vmem:[#allocation7] sm:$0xff] %vm469, %v464
    // Predicated region
    $region38: #{tpu_custom_call.1} parent=1 // pred_check
      _
    $region39: #{tpu_custom_call.1} parent=1 // pred_check_branch
      %472 = sbr.rel (0) target = $region41
    $region40: #{tpu_custom_call.1} parent=1 // pred_region
      %s474 = ssub.s32 128, 128
      %475 = vsyncadd [#allocation4], %s474
      %s477 = sshll.u32 [#allocation7], 4
      %s478 = int_to_ptr.vmem [resolvable:$true] %s477
      %480 = dma.vmem_to_hbm [thread:$0]  %s478, 128, %s7, [#allocation4]
    $region41: #{tpu_custom_call.1} parent=1 // pred_fallthru
      _
    // Predicated region
    $region42: #{tpu_custom_call.1} parent=1 // pred_check
      _
    $region43: #{tpu_custom_call.1} parent=1 // pred_check_branch
      %482 = sbr.rel (0) target = $region45
    $region44: #{tpu_custom_call.1} parent=1 // pred_region
      %483 = dma.done [#allocation4], 128
    $region45: #{tpu_custom_call.1} parent=1 // pred_fallthru
      _
    %484 = vsyncpa [#allocation3], 1
    %485 = vsyncpa [#allocation6], 1
    %486 = vsyncpa [#allocation4], 1

</llo_original>
